<compile_context>
chip_gen: v7x
topology: tpu7x:2x2x1
jax: 0.10.0
libtpu: 0.0.40
codegen_flags: <defaults>
</compile_context>

<pallas_src>
import numpy as np
import jax
import jax.numpy as jnp
from jax import lax
from jax.experimental import pallas as pl
from jax.experimental.pallas import tpu as pltpu

B, C, H, W = 2, 4, 16, 16
K = 3                         # conv kernel size, padding=1 (SAME)
HIDDEN = 8                    # conv output channels
NUM_CLASSES = 10
OUT_PAD = 128                 # lane-dense padded logits width
HP, WP = H + 2, W + 2         # zero-padded spatial dims
KKC = K * K * C               # 36 im2col rows, ordering (c, kh, kw) == PyTorch weight flatten
MAX_SHIFT = (K - 1) * WP + (K - 1)        # largest tap offset in the flattened layout (= 38)
FLAT = B * HP * WP                        # 648 flattened padded positions
SEQ_PAD = 640                             # 5*128; covers every valid position (max index 609)
FLAT_PAD = SEQ_PAD + MAX_SHIFT            # 678, so every tap slice has full length SEQ_PAD

# "normal x transposed" dims: contract the last dim of both operands (q @ k.T pattern).
NT_DIMS = (((1,), (1,)), ((), ()))


def _classifier_kernel(w1_ref, xcol_ref, b1_ref, pool_ref, w2_ref, b2_ref, out_ref):
    """Whole forward pass in one program (no grid).

    w1_ref   : (HIDDEN, KKC)      bf16 conv weights, flattened (c, kh, kw)
    xcol_ref : (KKC, SEQ_PAD)     bf16 im2col, spatial*batch on lanes
    b1_ref   : (HIDDEN, 1)        f32 conv bias
    pool_ref : (B, SEQ_PAD)       f32 constant avg-pool matrix (1/(H*W) at valid lanes)
    w2_ref   : (HIDDEN, OUT_PAD)  f32 classifier weights, zero-padded to 128 lanes
    b2_ref   : (1, OUT_PAD)       f32 classifier bias, zero-padded
    out_ref  : (B, OUT_PAD)       f32 padded logits (sliced to NUM_CLASSES in the wrapper)
    """
    # Conv as ONE lane-dense MXU dot (bf16 operands, f32 accumulate): contraction dim 36.
    h = jnp.dot(w1_ref[...], xcol_ref[...],
                preferred_element_type=jnp.float32)               # (HIDDEN, SEQ_PAD) f32

    # Bias + ReLU in f32 on the VPU (whole vregs, lane-dense).
    h = jnp.maximum(h + b1_ref[...], 0.0)

    # Global average pool = one lane-axis contraction against the constant pooling
    # matrix; it also zeroes every garbage lane (padding / row-wrap / cross-batch / tail).
    pooled = lax.dot_general(pool_ref[...], h, NT_DIMS,
                             preferred_element_type=jnp.float32)  # (B, HIDDEN)

    # Classifier head: one dot for the whole batch, single unmasked full-block store.
    out_ref[...] = (jnp.dot(pooled, w2_ref[...],
                            preferred_element_type=jnp.float32)
                    + b2_ref[...])                                # (B, OUT_PAD)


def _pool_matrix():
    """(B, SEQ_PAD) constant: 1/(H*W) at flattened positions q = b*HP*WP + i*WP + j, i<H, j<W."""
    p = np.zeros((B, SEQ_PAD), dtype=np.float32)
    for b in range(B):
        for i in range(H):
            row = b * HP * WP + i * WP
            p[b, row:row + W] = 1.0 / (H * W)
    return p


_POOL = _pool_matrix()


@jax.jit
def deep_classifier_forward(x, w_conv, b_conv, w_fc, b_fc):
    """x: (B, C, H, W) float32 -> logits (B, NUM_CLASSES) float32."""
    # Wrapper glue (~100 KB of XLA work on a ~4 KB input): zero-pad, flatten
    # (batch, padded H, padded W) per channel, then build the lane-dense im2col.
    xp = jnp.pad(x, ((0, 0), (0, 0), (1, 1), (1, 1)))                      # (B, C, HP, WP)
    xall = jnp.transpose(xp, (1, 0, 2, 3)).reshape(C, FLAT)                # (C, 648)
    xall = jnp.pad(xall, ((0, 0), (0, FLAT_PAD - FLAT)))                   # (C, 678)

    shifts = [dh * WP + dw for dh in range(K) for dw in range(K)]
    xcol = jnp.stack([xall[:, s:s + SEQ_PAD] for s in shifts], axis=1)     # (C, 9, SEQ_PAD)
    xcol = xcol.reshape(KKC, SEQ_PAD).astype(jnp.bfloat16)                 # (36, 640) bf16

    # Parameter repacking (tiny, constant-shaped).
    w1 = w_conv.reshape(HIDDEN, KKC).astype(jnp.bfloat16)                  # (8, 36) bf16
    b1 = b_conv.reshape(HIDDEN, 1).astype(jnp.float32)
    w2 = jnp.zeros((HIDDEN, OUT_PAD), jnp.float32).at[:, :NUM_CLASSES].set(w_fc.T)
    b2 = jnp.zeros((1, OUT_PAD), jnp.float32).at[:, :NUM_CLASSES].set(b_fc)
    pool = jnp.asarray(_POOL)                                              # (B, SEQ_PAD) f32

    flops = (2 * HIDDEN * KKC * SEQ_PAD
             + 2 * B * HIDDEN * SEQ_PAD
             + 2 * B * HIDDEN * OUT_PAD)
    bytes_accessed = (2 * (HIDDEN * KKC + KKC * SEQ_PAD)                   # bf16 operands
                      + 4 * (HIDDEN + B * SEQ_PAD + HIDDEN * OUT_PAD
                             + OUT_PAD + B * OUT_PAD))

    out = pl.pallas_call(
        _classifier_kernel,
        out_shape=jax.ShapeDtypeStruct((B, OUT_PAD), jnp.float32),
        in_specs=[pl.BlockSpec(memory_space=pltpu.MemorySpace.VMEM)] * 6,
        out_specs=pl.BlockSpec(memory_space=pltpu.MemorySpace.VMEM),
        cost_estimate=pl.CostEstimate(flops=flops, transcendentals=0,
                                      bytes_accessed=bytes_accessed),
    )(w1, xcol, b1, pool, w2, b2)

    return out[:, :NUM_CLASSES]


def _reference_forward(x, w_conv, b_conv, w_fc, b_fc):
    """Pure-JAX reference (real conv) for correctness check."""
    y = lax.conv_general_dilated(
        x, w_conv, window_strides=(1, 1), padding="SAME",
        dimension_numbers=("NCHW", "OIHW", "NCHW"))
    y = y + b_conv.reshape(1, HIDDEN, 1, 1)
    y = jnp.maximum(y, 0.0)
    pooled = jnp.mean(y, axis=(2, 3))                                      # (B, HIDDEN)
    return pooled @ w_fc.T + b_fc.reshape(1, NUM_CLASSES)


if __name__ == "__main__":
    key = jax.random.PRNGKey(0)
    kx, kw1, kb1, kw2, kb2 = jax.random.split(key, 5)

    x = jax.random.normal(kx, (B, C, H, W), dtype=jnp.float32)
    # deterministic synthetic parameters (shapes follow the wrapped net)
    w_conv = 0.1 * jax.random.normal(kw1, (HIDDEN, C, K, K), dtype=jnp.float32)
    b_conv = 0.1 * jax.random.normal(kb1, (HIDDEN,), dtype=jnp.float32)
    w_fc = 0.1 * jax.random.normal(kw2, (NUM_CLASSES, HIDDEN), dtype=jnp.float32)
    b_fc = 0.1 * jax.random.normal(kb2, (NUM_CLASSES,), dtype=jnp.float32)

    logits = jax.block_until_ready(
        deep_classifier_forward(x, w_conv, b_conv, w_fc, b_fc))

    ref = _reference_forward(x, w_conv, b_conv, w_fc, b_fc)
    assert logits.shape == (B, NUM_CLASSES)
    # bf16 MXU operands with f32 accumulation: tolerance loosened slightly vs the pure-f32 path.
    assert jnp.allclose(logits, ref, atol=5e-3, rtol=5e-3), "mismatch vs reference"

    print("KERNEL_OK")
</pallas_src>

<mosaic_0001>
module attributes {stable_mosaic.version = 11 : i64} {
  func.func @_classifier_kernel(%arg0: memref<8x36xbf16, #tpu.memory_space<vmem>>, %arg1: memref<36x640xbf16, #tpu.memory_space<vmem>>, %arg2: memref<8x1xf32, #tpu.memory_space<vmem>>, %arg3: memref<2x640xf32, #tpu.memory_space<vmem>>, %arg4: memref<8x128xf32, #tpu.memory_space<vmem>>, %arg5: memref<1x128xf32, #tpu.memory_space<vmem>>, %arg6: memref<2x128xf32, #tpu.memory_space<vmem>>) attributes {dimension_semantics = [], scalar_prefetch = 0 : i64, scratch_operands = 0 : i64, tpu.core_type = #tpu.core_type<tc>} {
    %c0 = arith.constant 0 : index
    %c0_0 = arith.constant 0 : index
    %0 = vector.load %arg0[%c0, %c0_0] : memref<8x36xbf16, #tpu.memory_space<vmem>>, vector<8x36xbf16>
    %c0_1 = arith.constant 0 : index
    %c0_2 = arith.constant 0 : index
    %1 = vector.load %arg1[%c0_1, %c0_2] : memref<36x640xbf16, #tpu.memory_space<vmem>>, vector<36x640xbf16>
    %cst = arith.constant dense<0.000000e+00> : vector<8x640xf32>
    %2 = tpu.matmul %0, %1, %cst {dimension_numbers = #tpu.dot_dimension_numbers<[1], [0], [0], [1], [0, 0, 1, 1], [], []>} : vector<8x36xbf16>, vector<36x640xbf16>, vector<8x640xf32> -> vector<8x640xf32>
    %c0_3 = arith.constant 0 : index
    %c0_4 = arith.constant 0 : index
    %3 = vector.load %arg2[%c0_3, %c0_4] : memref<8x1xf32, #tpu.memory_space<vmem>>, vector<8x1xf32>
    %4 = vector.broadcast %3 : vector<8x1xf32> to vector<8x640xf32>
    %5 = arith.addf %2, %4 : vector<8x640xf32>
    %cst_5 = arith.constant 0.000000e+00 : f32
    %6 = vector.broadcast %cst_5 : f32 to vector<8x640xf32>
    %7 = arith.maximumf %5, %6 : vector<8x640xf32>
    %c0_6 = arith.constant 0 : index
    %c0_7 = arith.constant 0 : index
    %8 = vector.load %arg3[%c0_6, %c0_7] : memref<2x640xf32, #tpu.memory_space<vmem>>, vector<2x640xf32>
    %cst_8 = arith.constant dense<0.000000e+00> : vector<2x8xf32>
    %9 = tpu.matmul %8, %7, %cst_8 {dimension_numbers = #tpu.dot_dimension_numbers<[1], [1], [0], [0], [0, 0, 1, 0], [], []>} : vector<2x640xf32>, vector<8x640xf32>, vector<2x8xf32> -> vector<2x8xf32>
    %c0_9 = arith.constant 0 : index
    %c0_10 = arith.constant 0 : index
    %10 = vector.load %arg4[%c0_9, %c0_10] : memref<8x128xf32, #tpu.memory_space<vmem>>, vector<8x128xf32>
    %cst_11 = arith.constant dense<0.000000e+00> : vector<2x128xf32>
    %11 = tpu.matmul %9, %10, %cst_11 {dimension_numbers = #tpu.dot_dimension_numbers<[1], [0], [0], [1], [0, 0, 1, 1], [], []>} : vector<2x8xf32>, vector<8x128xf32>, vector<2x128xf32> -> vector<2x128xf32>
    %c0_12 = arith.constant 0 : index
    %c0_13 = arith.constant 0 : index
    %12 = vector.load %arg5[%c0_12, %c0_13] : memref<1x128xf32, #tpu.memory_space<vmem>>, vector<1x128xf32>
    %13 = vector.broadcast %12 : vector<1x128xf32> to vector<2x128xf32>
    %14 = arith.addf %11, %13 : vector<2x128xf32>
    %c0_14 = arith.constant 0 : index
    %c0_15 = arith.constant 0 : index
    %15 = vector.load %arg6[%c0_14, %c0_15] : memref<2x128xf32, #tpu.memory_space<vmem>>, vector<2x128xf32>
    tpu.vector_store %arg6[%c0_14, %c0_15], %14 {strides = array<i32>} : memref<2x128xf32, #tpu.memory_space<vmem>>, vector<2x128xf32>,
    return
  }
}

</mosaic_0001>

<llo_original>
// kernel: deep_classifier_forward.1
$region0: #{deep_classifier_forward.1}
  #allocation0 [shape = 'u32[]', space=smem, size = 0x4, offset = 0x4, fixed_abs, tag = 'smem constant byte address 0x4 - core index']
  #allocation1 [shape = 'u32[144,128]{1,0:T(1,128)}', space=vmem, size = 0x12000, scoped, tag = 'internal scratch']
  %s0 = inlined_call_operand.vmem [shape: bf16[8,36], index: 0, kind: input, shape index: {}]
  %s1 = inlined_call_operand.vmem [shape: bf16[36,640], index: 1, kind: input, shape index: {}]
  %s2 = inlined_call_operand.vmem [shape: f32[8,1], index: 2, kind: input, shape index: {}]
  %s3 = inlined_call_operand.vmem [shape: f32[2,640], index: 3, kind: input, shape index: {}]
  %s4 = inlined_call_operand.vmem [shape: f32[8,128], index: 4, kind: input, shape index: {}]
  %s5 = inlined_call_operand.vmem [shape: f32[1,128], index: 5, kind: input, shape index: {}]
  %s6 = inlined_call_operand.hbm [shape: f32[2,128], index: 6, kind: output, shape index: {}]
  %s7 = sld [smem:[#allocation0]]
  $region34: #{deep_classifier_forward.1} parent=0
    _
  %s9 = ssub.s32 1, %s7
  %s10 = scalar_select 0, %s9, %s7
  $region1: #{deep_classifier_forward.1} parent=0
    #allocation2 [shape = 'u8[1024]{0}', space=vmem, size = 0x400, scoped, tag = 'output window, operand 0, single buffered']
    #allocation3 [shape = 's32[1]{0}', space=sflag, size = 0x4, scoped, tag = 'scoped memory for deep_classifier_forward.1']
    %11 = vsyncpa [#allocation3], 0
    // Predicated region
    $region2: #{deep_classifier_forward.1} parent=1 // pred_check
      _
    $region3: #{deep_classifier_forward.1} parent=1 // pred_check_branch
      %13 = sbr.rel (0) target = $region5
    $region4: #{deep_classifier_forward.1} parent=1 // pred_region
      _
    $region5: #{deep_classifier_forward.1} parent=1 // pred_fallthru
      _
    // Predicated region
    $region6: #{deep_classifier_forward.1} parent=1 // pred_check
      _
    $region7: #{deep_classifier_forward.1} parent=1 // pred_check_branch
      %15 = sbr.rel (0) target = $region9
    $region8: #{deep_classifier_forward.1} parent=1 // pred_region
      _
    $region9: #{deep_classifier_forward.1} parent=1 // pred_fallthru
      _
    // Predicated region
    $region10: #{deep_classifier_forward.1} parent=1 // pred_check
      _
    $region11: #{deep_classifier_forward.1} parent=1 // pred_check_branch
      %17 = sbr.rel (0) target = $region13
    $region12: #{deep_classifier_forward.1} parent=1 // pred_region
      _
    $region13: #{deep_classifier_forward.1} parent=1 // pred_fallthru
      _
    // Predicated region
    $region14: #{deep_classifier_forward.1} parent=1 // pred_check
      _
    $region15: #{deep_classifier_forward.1} parent=1 // pred_check_branch
      %19 = sbr.rel (0) target = $region17
    $region16: #{deep_classifier_forward.1} parent=1 // pred_region
      _
    $region17: #{deep_classifier_forward.1} parent=1 // pred_fallthru
      _
    // Predicated region
    $region18: #{deep_classifier_forward.1} parent=1 // pred_check
      _
    $region19: #{deep_classifier_forward.1} parent=1 // pred_check_branch
      %21 = sbr.rel (0) target = $region21
    $region20: #{deep_classifier_forward.1} parent=1 // pred_region
      _
    $region21: #{deep_classifier_forward.1} parent=1 // pred_fallthru
      _
    // Predicated region
    $region22: #{deep_classifier_forward.1} parent=1 // pred_check
      _
    $region23: #{deep_classifier_forward.1} parent=1 // pred_check_branch
      %23 = sbr.rel (0) target = $region25
    $region24: #{deep_classifier_forward.1} parent=1 // pred_region
      _
    $region25: #{deep_classifier_forward.1} parent=1 // pred_fallthru
      _
    %v25 = vld [vmem:[%s0] sm:$0xf]
    %v26 = vld [vmem:[%s1] sm:$0xff]
    %v27 = vld [vmem:[%s1 + $0x8] sm:$0xff]
    %v28 = vld [vmem:[%s1 + $0x10] sm:$0xf]
    %v29 = vld [vmem:[%s1 + $0x14] sm:$0xff]
    %v30 = vld [vmem:[%s1 + $0x1c] sm:$0xff]
    %v31 = vld [vmem:[%s1 + $0x24] sm:$0xf]
    %v32 = vld [vmem:[%s1 + $0x28] sm:$0xff]
    %v33 = vld [vmem:[%s1 + $0x30] sm:$0xff]
    %v34 = vld [vmem:[%s1 + $0x38] sm:$0xf]
    %v35 = vld [vmem:[%s1 + $0x3c] sm:$0xff]
    %v36 = vld [vmem:[%s1 + $0x44] sm:$0xff]
    %v37 = vld [vmem:[%s1 + $0x4c] sm:$0xf]
    %v38 = vld [vmem:[%s1 + $0x50] sm:$0x33]
    %v39 = vld [vmem:[%s1 + $0x58] sm:$0x33]
    %v40 = vld [vmem:[%s1 + $0x60] sm:$0x3]
    %v41 = vld [vmem:[%s2] sm:$0xff]
    %43 = vset.pattern.permute.xlu0 0
    %44 = vperm.xlu0 %43, %v41
    %v45 = vpop.permute.xlu0 %44
    %v62 = vunpack.c.l.b16 %v26
    %v63 = vunpack.c.h.b16 %v26
    %v64 = vunpack.c.l.b16 %v27
    %v65 = vunpack.c.h.b16 %v27
    %v66 = vunpack.c.l.b16 %v28
    %v67 = vunpack.c.l.b16 %v29
    %v68 = vunpack.c.h.b16 %v29
    %v69 = vunpack.c.l.b16 %v30
    %v70 = vunpack.c.h.b16 %v30
    %v71 = vunpack.c.l.b16 %v31
    %v72 = vunpack.c.l.b16 %v32
    %v73 = vunpack.c.h.b16 %v32
    %v74 = vunpack.c.l.b16 %v33
    %v75 = vunpack.c.h.b16 %v33
    %v76 = vunpack.c.l.b16 %v34
    %v77 = vunpack.c.l.b16 %v35
    %v78 = vunpack.c.h.b16 %v35
    %v79 = vunpack.c.l.b16 %v36
    %v80 = vunpack.c.h.b16 %v36
    %v81 = vunpack.c.l.b16 %v37
    %v82 = vunpack.c.l.b16 %v38
    %v83 = vunpack.c.h.b16 %v38
    %v84 = vunpack.c.l.b16 %v39
    %v85 = vunpack.c.h.b16 %v39
    %v86 = vunpack.c.l.b16 %v40
    %v87 = vpack.c.b16 %v67, %v62
    %v88 = vpack.c.b16 %v68, %v63
    %v89 = vpack.c.b16 %v69, %v64
    %v90 = vpack.c.b16 %v70, %v65
    %v91 = vpack.c.b16 %v71, %v66
    %v92 = vpack.c.b16 %v77, %v72
    %v93 = vpack.c.b16 %v78, %v73
    %v94 = vpack.c.b16 %v79, %v74
    %v95 = vpack.c.b16 %v80, %v75
    %v96 = vpack.c.b16 %v81, %v76
    %v97 = vpack.c.b16 %v82, %v82
    %v98 = vpack.c.b16 %v83, %v83
    %v99 = vpack.c.b16 %v84, %v84
    %v100 = vpack.c.b16 %v85, %v85
    %v101 = vpack.c.b16 %v86, %v86
    %vm112 = vcmask 293888
    %v114 = vsel %vm112, %v25, 0
    %vm116 = vcmask 1041408
    %v118 = vsel %vm116, %v97, 0
    %v121 = vsel %vm116, %v98, 0
    %v124 = vsel %vm116, %v99, 0
    %v127 = vsel %vm116, %v100, 0
    %v130 = vsel %vm116, %v101, 0
    %132 = vmatprep.subr.bf16.mxu0 %v88
    %133 = vmatpush1.bf16.msra.mxu0 %v87
    %134 = vmatprep.subr.bf16.mxu0 %v93
    %135 = vmatpush1.bf16.msra.mxu0 %v92
    %136 = vmatprep.subr.bf16.mxu0 %v121
    %137 = vmatpush1.bf16.msra.mxu0 %v118
    %138 = vmatprep.subr.bf16.mxu0 0
    %139 = vmatpush1.bf16.msra.mxu0 0
    %140 = vmatprep.subr.bf16.mxu0 0
    %141 = vmatpush1.bf16.msra.mxu0 0
    %142 = vmatprep.subr.bf16.mxu0 0
    %143 = vmatpush1.bf16.msra.mxu0 0
    %144 = vmatprep.subr.bf16.mxu0 0
    %145 = vmatpush1.bf16.msra.mxu0 0
    %146 = vmatprep.subr.bf16.mxu0 0
    %147 = vmatpush1.bf16.msra.mxu0 0
    %148 = vmatprep.subr.bf16.mxu0 0
    %149 = vmatpush1.bf16.msra.mxu0 0
    %150 = vmatprep.subr.bf16.mxu0 0
    %151 = vmatpush1.bf16.msra.mxu0 0
    %152 = vmatprep.subr.bf16.mxu0 0
    %153 = vmatpush1.bf16.msra.mxu0 0
    %154 = vmatprep.subr.bf16.mxu0 0
    %155 = vmatpush1.bf16.msra.mxu0 0
    %156 = vmatprep.subr.bf16.mxu0 0
    %157 = vmatpush1.bf16.msra.mxu0 0
    %158 = vmatprep.subr.bf16.mxu0 0
    %159 = vmatpush1.bf16.msra.mxu0 0
    %160 = vmatprep.subr.bf16.mxu0 0
    %161 = vmatpush1.bf16.msra.mxu0 0
    %162 = vmatprep.subr.bf16.mxu0 0
    %163 = vmatpush1.bf16.msra.mxu0 0
    %164 = vmatprep.mubr.bf16.mxu0 0
    %165 = vmatmul.mubr.bf16.gmra.mrb[0].mxu0 %v114
    %v166 = vpop.f32.mrb[0].mxu0
    %v167 = vadd.f32 %v45, %v166
    %v168 = vpop.f32.mrb[0].mxu0
    %v169 = vadd.f32 %v45, %v168
    %v170 = vpop.f32.mrb[0].mxu0
    %v171 = vpop.f32.mrb[0].mxu0
    %172 = vdwg.mxu0
    %173 = vmatprep.subr.bf16.mxu0 %v90
    %174 = vmatpush1.bf16.msra.mxu0 %v89
    %175 = vmatprep.subr.bf16.mxu0 %v95
    %176 = vmatpush1.bf16.msra.mxu0 %v94
    %177 = vmatprep.subr.bf16.mxu0 %v127
    %178 = vmatpush1.bf16.msra.mxu0 %v124
    %179 = vmatprep.subr.bf16.mxu0 0
    %180 = vmatpush1.bf16.msra.mxu0 0
    %181 = vmatprep.subr.bf16.mxu0 0
    %182 = vmatpush1.bf16.msra.mxu0 0
    %183 = vmatprep.subr.bf16.mxu0 0
    %184 = vmatpush1.bf16.msra.mxu0 0
    %185 = vmatprep.subr.bf16.mxu0 0
    %186 = vmatpush1.bf16.msra.mxu0 0
    %187 = vmatprep.subr.bf16.mxu0 0
    %188 = vmatpush1.bf16.msra.mxu0 0
    %189 = vmatprep.subr.bf16.mxu0 0
    %190 = vmatpush1.bf16.msra.mxu0 0
    %191 = vmatprep.subr.bf16.mxu0 0
    %192 = vmatpush1.bf16.msra.mxu0 0
    %193 = vmatprep.subr.bf16.mxu0 0
    %194 = vmatpush1.bf16.msra.mxu0 0
    %195 = vmatprep.subr.bf16.mxu0 0
    %196 = vmatpush1.bf16.msra.mxu0 0
    %197 = vmatprep.subr.bf16.mxu0 0
    %198 = vmatpush1.bf16.msra.mxu0 0
    %199 = vmatprep.subr.bf16.mxu0 0
    %200 = vmatpush1.bf16.msra.mxu0 0
    %201 = vmatprep.subr.bf16.mxu0 0
    %202 = vmatpush1.bf16.msra.mxu0 0
    %203 = vmatprep.subr.bf16.mxu0 0
    %204 = vmatpush1.bf16.msra.mxu0 0
    %205 = vmatprep.mubr.bf16.mxu0 0
    %206 = vmatmul.mubr.bf16.gmra.mrb[0].mxu0 %v114
    %v207 = vpop.f32.mrb[0].mxu0
    %v208 = vadd.f32 %v45, %v207
    %v209 = vpop.f32.mrb[0].mxu0
    %v210 = vadd.f32 %v45, %v209
    %v211 = vpop.f32.mrb[0].mxu0
    %v212 = vpop.f32.mrb[0].mxu0
    %213 = vdwg.mxu0
    %214 = vmatprep.subr.bf16.mxu0 0
    %215 = vmatpush1.bf16.msra.mxu0 %v91
    %216 = vmatprep.subr.bf16.mxu0 0
    %217 = vmatpush1.bf16.msra.mxu0 %v96
    %218 = vmatprep.subr.bf16.mxu0 0
    %219 = vmatpush1.bf16.msra.mxu0 %v130
    %220 = vmatprep.subr.bf16.mxu0 0
    %221 = vmatpush1.bf16.msra.mxu0 0
    %222 = vmatprep.subr.bf16.mxu0 0
    %223 = vmatpush1.bf16.msra.mxu0 0
    %224 = vmatprep.subr.bf16.mxu0 0
    %225 = vmatpush1.bf16.msra.mxu0 0
    %226 = vmatprep.subr.bf16.mxu0 0
    %227 = vmatpush1.bf16.msra.mxu0 0
    %228 = vmatprep.subr.bf16.mxu0 0
    %229 = vmatpush1.bf16.msra.mxu0 0
    %230 = vmatprep.subr.bf16.mxu0 0
    %231 = vmatpush1.bf16.msra.mxu0 0
    %232 = vmatprep.subr.bf16.mxu0 0
    %233 = vmatpush1.bf16.msra.mxu0 0
    %234 = vmatprep.subr.bf16.mxu0 0
    %235 = vmatpush1.bf16.msra.mxu0 0
    %236 = vmatprep.subr.bf16.mxu0 0
    %237 = vmatpush1.bf16.msra.mxu0 0
    %238 = vmatprep.subr.bf16.mxu0 0
    %239 = vmatpush1.bf16.msra.mxu0 0
    %240 = vmatprep.subr.bf16.mxu0 0
    %241 = vmatpush1.bf16.msra.mxu0 0
    %242 = vmatprep.subr.bf16.mxu0 0
    %243 = vmatpush1.bf16.msra.mxu0 0
    %244 = vmatprep.subr.bf16.mxu0 0
    %245 = vmatpush1.bf16.msra.mxu0 0
    %246 = vmatprep.mubr.bf16.mxu0 0
    %247 = vmatmul.mubr.bf16.gmra.mrb[0].mxu0 %v114
    %v248 = vpop.f32.mrb[0].mxu0
    %v249 = vadd.f32 %v45, %v248
    %v250 = vpop.f32.mrb[0].mxu0
    %v251 = vpop.f32.mrb[0].mxu0
    %v252 = vpop.f32.mrb[0].mxu0
    %253 = vdwg.mxu0
    %v254 = vmax.f32 %v167, 0.0
    %v255 = vmax.f32 %v169, 0.0
    %v256 = vmax.f32 %v208, 0.0
    %v257 = vmax.f32 %v210, 0.0
    %v258 = vmax.f32 %v249, 0.0
    %v259 = vld [vmem:[%s3] sm:$0xff]
    %v260 = vld [vmem:[%s3 + $0x8] sm:$0x3]
    %v263 = vcombine.high %v259, %v259
    %v265 = vunpack.c.l.s4 1983009808
    %v266 = vunpack.c.0.s8 %v265
    %v267 = vlaneseq
    %v268 = vshrl.u32 %v267, 7
    %v269 = vsub.s32 %v266, %v268
    %v270 = vrot.slane %v259, %v269
    %v272 = vunpack.c.l.s4 1983009808
    %v273 = vunpack.c.0.s8 %v272
    %v274 = vlaneseq
    %v275 = vshrl.u32 %v274, 7
    %v276 = vsub.s32 %v273, %v275
    %v277 = vrot.slane %v263, %v276
    %v278 = vcombine.high %v270, %v270
    %v279 = vcombine.high %v277, %v277
    %v281 = vunpack.c.l.s4 1983009808
    %v282 = vunpack.c.0.s8 %v281
    %v283 = vlaneseq
    %v284 = vshrl.u32 %v283, 7
    %v285 = vsub.s32 %v282, %v284
    %v286 = vrot.slane %v260, %v285
    %292 = vmatprep.subr.mxu0 %v255
    %293 = vmatpush1.xpose.msra.mxu0 %v254
    %294 = vmatprep.subr.mxu0 0.0
    %295 = vmatpush1.xpose.msra.mxu0 0.0
    %296 = vmatprep.subr.mxu0 0.0
    %297 = vmatpush1.xpose.msra.mxu0 0.0
    %298 = vmatprep.subr.mxu0 0.0
    %299 = vmatpush1.xpose.msra.mxu0 0.0
    %300 = vmatprep.subr.mxu0 0.0
    %301 = vmatpush1.xpose.msra.mxu0 0.0
    %302 = vmatprep.subr.mxu0 0.0
    %303 = vmatpush1.xpose.msra.mxu0 0.0
    %304 = vmatprep.subr.mxu0 0.0
    %305 = vmatpush1.xpose.msra.mxu0 0.0
    %306 = vmatprep.subr.mxu0 0.0
    %307 = vmatpush1.xpose.msra.mxu0 0.0
    %308 = vmatprep.subr.mxu0 0.0
    %309 = vmatpush1.xpose.msra.mxu0 0.0
    %310 = vmatprep.subr.mxu0 0.0
    %311 = vmatpush1.xpose.msra.mxu0 0.0
    %312 = vmatprep.subr.mxu0 0.0
    %313 = vmatpush1.xpose.msra.mxu0 0.0
    %314 = vmatprep.subr.mxu0 0.0
    %315 = vmatpush1.xpose.msra.mxu0 0.0
    %316 = vmatprep.subr.mxu0 0.0
    %317 = vmatpush1.xpose.msra.mxu0 0.0
    %318 = vmatprep.subr.mxu0 0.0
    %319 = vmatpush1.xpose.msra.mxu0 0.0
    %320 = vmatprep.subr.mxu0 0.0
    %321 = vmatpush1.xpose.msra.mxu0 0.0
    %322 = vmatprep.subr.mxu0 0.0
    %323 = vmatpush1.xpose.msra.mxu0 0.0
    %324 = vmatprep.subr.mxu0 0.0
    %325 = vmatpush1.xpose.msra.mxu0 0.0
    %326 = vmatprep.subr.mxu0 0.0
    %327 = vmatpush1.xpose.msra.mxu0 0.0
    %328 = vmatprep.subr.mxu0 0.0
    %329 = vmatpush1.xpose.msra.mxu0 0.0
    %330 = vmatprep.subr.mxu0 0.0
    %331 = vmatpush1.xpose.msra.mxu0 0.0
    %332 = vmatprep.subr.mxu0 0.0
    %333 = vmatpush1.xpose.msra.mxu0 0.0
    %334 = vmatprep.subr.mxu0 0.0
    %335 = vmatpush1.xpose.msra.mxu0 0.0
    %336 = vmatprep.subr.mxu0 0.0
    %337 = vmatpush1.xpose.msra.mxu0 0.0
    %338 = vmatprep.subr.mxu0 0.0
    %339 = vmatpush1.xpose.msra.mxu0 0.0
    %340 = vmatprep.subr.mxu0 0.0
    %341 = vmatpush1.xpose.msra.mxu0 0.0
    %342 = vmatprep.subr.mxu0 0.0
    %343 = vmatpush1.xpose.msra.mxu0 0.0
    %344 = vmatprep.subr.mxu0 0.0
    %345 = vmatpush1.xpose.msra.mxu0 0.0
    %346 = vmatprep.subr.mxu0 0.0
    %347 = vmatpush1.xpose.msra.mxu0 0.0
    %348 = vmatprep.subr.mxu0 0.0
    %349 = vmatpush1.xpose.msra.mxu0 0.0
    %350 = vmatprep.subr.mxu0 0.0
    %351 = vmatpush1.xpose.msra.mxu0 0.0
    %352 = vmatprep.subr.mxu0 0.0
    %353 = vmatpush1.xpose.msra.mxu0 0.0
    %354 = vmatprep.subr.mxu0 0.0
    %355 = vmatpush1.xpose.msra.mxu0 0.0
    %356 = vmatprep.mubr.f32.mxu0 %v278
    %357 = vmatmul.mubr.f32.gmra.mrb[0].mxu0 %v270
    %v358 = vpop.f32.mrb[0].mxu0
    %v359 = vadd.f32 0.0, %v358
    %v360 = vpop.f32.mrb[0].mxu0
    %361 = vdwg.mxu0
    %362 = vmatprep.subr.mxu0 %v257
    %363 = vmatpush1.xpose.msra.mxu0 %v256
    %364 = vmatprep.subr.mxu0 0.0
    %365 = vmatpush1.xpose.msra.mxu0 0.0
    %366 = vmatprep.subr.mxu0 0.0
    %367 = vmatpush1.xpose.msra.mxu0 0.0
    %368 = vmatprep.subr.mxu0 0.0
    %369 = vmatpush1.xpose.msra.mxu0 0.0
    %370 = vmatprep.subr.mxu0 0.0
    %371 = vmatpush1.xpose.msra.mxu0 0.0
    %372 = vmatprep.subr.mxu0 0.0
    %373 = vmatpush1.xpose.msra.mxu0 0.0
    %374 = vmatprep.subr.mxu0 0.0
    %375 = vmatpush1.xpose.msra.mxu0 0.0
    %376 = vmatprep.subr.mxu0 0.0
    %377 = vmatpush1.xpose.msra.mxu0 0.0
    %378 = vmatprep.subr.mxu0 0.0
    %379 = vmatpush1.xpose.msra.mxu0 0.0
    %380 = vmatprep.subr.mxu0 0.0
    %381 = vmatpush1.xpose.msra.mxu0 0.0
    %382 = vmatprep.subr.mxu0 0.0
    %383 = vmatpush1.xpose.msra.mxu0 0.0
    %384 = vmatprep.subr.mxu0 0.0
    %385 = vmatpush1.xpose.msra.mxu0 0.0
    %386 = vmatprep.subr.mxu0 0.0
    %387 = vmatpush1.xpose.msra.mxu0 0.0
    %388 = vmatprep.subr.mxu0 0.0
    %389 = vmatpush1.xpose.msra.mxu0 0.0
    %390 = vmatprep.subr.mxu0 0.0
    %391 = vmatpush1.xpose.msra.mxu0 0.0
    %392 = vmatprep.subr.mxu0 0.0
    %393 = vmatpush1.xpose.msra.mxu0 0.0
    %394 = vmatprep.subr.mxu0 0.0
    %395 = vmatpush1.xpose.msra.mxu0 0.0
    %396 = vmatprep.subr.mxu0 0.0
    %397 = vmatpush1.xpose.msra.mxu0 0.0
    %398 = vmatprep.subr.mxu0 0.0
    %399 = vmatpush1.xpose.msra.mxu0 0.0
    %400 = vmatprep.subr.mxu0 0.0
    %401 = vmatpush1.xpose.msra.mxu0 0.0
    %402 = vmatprep.subr.mxu0 0.0
    %403 = vmatpush1.xpose.msra.mxu0 0.0
    %404 = vmatprep.subr.mxu0 0.0
    %405 = vmatpush1.xpose.msra.mxu0 0.0
    %406 = vmatprep.subr.mxu0 0.0
    %407 = vmatpush1.xpose.msra.mxu0 0.0
    %408 = vmatprep.subr.mxu0 0.0
    %409 = vmatpush1.xpose.msra.mxu0 0.0
    %410 = vmatprep.subr.mxu0 0.0
    %411 = vmatpush1.xpose.msra.mxu0 0.0
    %412 = vmatprep.subr.mxu0 0.0
    %413 = vmatpush1.xpose.msra.mxu0 0.0
    %414 = vmatprep.subr.mxu0 0.0
    %415 = vmatpush1.xpose.msra.mxu0 0.0
    %416 = vmatprep.subr.mxu0 0.0
    %417 = vmatpush1.xpose.msra.mxu0 0.0
    %418 = vmatprep.subr.mxu0 0.0
    %419 = vmatpush1.xpose.msra.mxu0 0.0
    %420 = vmatprep.subr.mxu0 0.0
    %421 = vmatpush1.xpose.msra.mxu0 0.0
    %422 = vmatprep.subr.mxu0 0.0
    %423 = vmatpush1.xpose.msra.mxu0 0.0
    %424 = vmatprep.subr.mxu0 0.0
    %425 = vmatpush1.xpose.msra.mxu0 0.0
    %426 = vmatprep.mubr.f32.mxu0 %v279
    %427 = vmatmul.mubr.f32.gmra.mrb[0].mxu0 %v277
    %v428 = vpop.f32.mrb[0].mxu0
    %v429 = vadd.f32 %v359, %v428
    %v430 = vpop.f32.mrb[0].mxu0
    %431 = vdwg.mxu0
    %432 = vmatprep.subr.mxu0 0.0
    %433 = vmatpush1.xpose.msra.mxu0 %v258
    %434 = vmatprep.subr.mxu0 0.0
    %435 = vmatpush1.xpose.msra.mxu0 0.0
    %436 = vmatprep.subr.mxu0 0.0
    %437 = vmatpush1.xpose.msra.mxu0 0.0
    %438 = vmatprep.subr.mxu0 0.0
    %439 = vmatpush1.xpose.msra.mxu0 0.0
    %440 = vmatprep.subr.mxu0 0.0
    %441 = vmatpush1.xpose.msra.mxu0 0.0
    %442 = vmatprep.subr.mxu0 0.0
    %443 = vmatpush1.xpose.msra.mxu0 0.0
    %444 = vmatprep.subr.mxu0 0.0
    %445 = vmatpush1.xpose.msra.mxu0 0.0
    %446 = vmatprep.subr.mxu0 0.0
    %447 = vmatpush1.xpose.msra.mxu0 0.0
    %448 = vmatprep.subr.mxu0 0.0
    %449 = vmatpush1.xpose.msra.mxu0 0.0
    %450 = vmatprep.subr.mxu0 0.0
    %451 = vmatpush1.xpose.msra.mxu0 0.0
    %452 = vmatprep.subr.mxu0 0.0
    %453 = vmatpush1.xpose.msra.mxu0 0.0
    %454 = vmatprep.subr.mxu0 0.0
    %455 = vmatpush1.xpose.msra.mxu0 0.0
    %456 = vmatprep.subr.mxu0 0.0
    %457 = vmatpush1.xpose.msra.mxu0 0.0
    %458 = vmatprep.subr.mxu0 0.0
    %459 = vmatpush1.xpose.msra.mxu0 0.0
    %460 = vmatprep.subr.mxu0 0.0
    %461 = vmatpush1.xpose.msra.mxu0 0.0
    %462 = vmatprep.subr.mxu0 0.0
    %463 = vmatpush1.xpose.msra.mxu0 0.0
    %464 = vmatprep.subr.mxu0 0.0
    %465 = vmatpush1.xpose.msra.mxu0 0.0
    %466 = vmatprep.subr.mxu0 0.0
    %467 = vmatpush1.xpose.msra.mxu0 0.0
    %468 = vmatprep.subr.mxu0 0.0
    %469 = vmatpush1.xpose.msra.mxu0 0.0
    %470 = vmatprep.subr.mxu0 0.0
    %471 = vmatpush1.xpose.msra.mxu0 0.0
    %472 = vmatprep.subr.mxu0 0.0
    %473 = vmatpush1.xpose.msra.mxu0 0.0
    %474 = vmatprep.subr.mxu0 0.0
    %475 = vmatpush1.xpose.msra.mxu0 0.0
    %476 = vmatprep.subr.mxu0 0.0
    %477 = vmatpush1.xpose.msra.mxu0 0.0
    %478 = vmatprep.subr.mxu0 0.0
    %479 = vmatpush1.xpose.msra.mxu0 0.0
    %480 = vmatprep.subr.mxu0 0.0
    %481 = vmatpush1.xpose.msra.mxu0 0.0
    %482 = vmatprep.subr.mxu0 0.0
    %483 = vmatpush1.xpose.msra.mxu0 0.0
    %484 = vmatprep.subr.mxu0 0.0
    %485 = vmatpush1.xpose.msra.mxu0 0.0
    %486 = vmatprep.subr.mxu0 0.0
    %487 = vmatpush1.xpose.msra.mxu0 0.0
    %488 = vmatprep.subr.mxu0 0.0
    %489 = vmatpush1.xpose.msra.mxu0 0.0
    %490 = vmatprep.subr.mxu0 0.0
    %491 = vmatpush1.xpose.msra.mxu0 0.0
    %492 = vmatprep.subr.mxu0 0.0
    %493 = vmatpush1.xpose.msra.mxu0 0.0
    %494 = vmatprep.subr.mxu0 0.0
    %495 = vmatpush1.xpose.msra.mxu0 0.0
    %496 = vmatprep.mubr.f32.mxu0 0.0
    %497 = vmatmul.mubr.f32.gmra.mrb[0].mxu0 %v286
    %v498 = vpop.f32.mrb[0].mxu0
    %v499 = vadd.f32 %v429, %v498
    %v500 = vpop.f32.mrb[0].mxu0
    %501 = vdwg.mxu0
    %v502 = vld [vmem:[%s4] sm:$0xff]
    %v503 = vld [vmem:[%s5] sm:$0x1]
    %v505 = vlaneseq
    %v506 = vshrl.u32 %v505, 7
    %v507 = vsub.s32 0, %v506
    %v508 = vrot.slane %v503, %v507
    %vm510 = vcmask 64512
    %v512 = vsel %vm510, %v499, 0
    %514 = vmatprep.subr.mxu0 0.0
    %515 = vmatpush1.msra.mxu0 %v502
    %516 = vmatprep.subr.mxu0 0.0
    %517 = vmatpush1.msra.mxu0 0.0
    %518 = vmatprep.subr.mxu0 0.0
    %519 = vmatpush1.msra.mxu0 0.0
    %520 = vmatprep.subr.mxu0 0.0
    %521 = vmatpush1.msra.mxu0 0.0
    %522 = vmatprep.subr.mxu0 0.0
    %523 = vmatpush1.msra.mxu0 0.0
    %524 = vmatprep.subr.mxu0 0.0
    %525 = vmatpush1.msra.mxu0 0.0
    %526 = vmatprep.subr.mxu0 0.0
    %527 = vmatpush1.msra.mxu0 0.0
    %528 = vmatprep.subr.mxu0 0.0
    %529 = vmatpush1.msra.mxu0 0.0
    %530 = vmatprep.subr.mxu0 0.0
    %531 = vmatpush1.msra.mxu0 0.0
    %532 = vmatprep.subr.mxu0 0.0
    %533 = vmatpush1.msra.mxu0 0.0
    %534 = vmatprep.subr.mxu0 0.0
    %535 = vmatpush1.msra.mxu0 0.0
    %536 = vmatprep.subr.mxu0 0.0
    %537 = vmatpush1.msra.mxu0 0.0
    %538 = vmatprep.subr.mxu0 0.0
    %539 = vmatpush1.msra.mxu0 0.0
    %540 = vmatprep.subr.mxu0 0.0
    %541 = vmatpush1.msra.mxu0 0.0
    %542 = vmatprep.subr.mxu0 0.0
    %543 = vmatpush1.msra.mxu0 0.0
    %544 = vmatprep.subr.mxu0 0.0
    %545 = vmatpush1.msra.mxu0 0.0
    %546 = vmatprep.subr.mxu0 0.0
    %547 = vmatpush1.msra.mxu0 0.0
    %548 = vmatprep.subr.mxu0 0.0
    %549 = vmatpush1.msra.mxu0 0.0
    %550 = vmatprep.subr.mxu0 0.0
    %551 = vmatpush1.msra.mxu0 0.0
    %552 = vmatprep.subr.mxu0 0.0
    %553 = vmatpush1.msra.mxu0 0.0
    %554 = vmatprep.subr.mxu0 0.0
    %555 = vmatpush1.msra.mxu0 0.0
    %556 = vmatprep.subr.mxu0 0.0
    %557 = vmatpush1.msra.mxu0 0.0
    %558 = vmatprep.subr.mxu0 0.0
    %559 = vmatpush1.msra.mxu0 0.0
    %560 = vmatprep.subr.mxu0 0.0
    %561 = vmatpush1.msra.mxu0 0.0
    %562 = vmatprep.subr.mxu0 0.0
    %563 = vmatpush1.msra.mxu0 0.0
    %564 = vmatprep.subr.mxu0 0.0
    %565 = vmatpush1.msra.mxu0 0.0
    %566 = vmatprep.subr.mxu0 0.0
    %567 = vmatpush1.msra.mxu0 0.0
    %568 = vmatprep.subr.mxu0 0.0
    %569 = vmatpush1.msra.mxu0 0.0
    %570 = vmatprep.subr.mxu0 0.0
    %571 = vmatpush1.msra.mxu0 0.0
    %572 = vmatprep.subr.mxu0 0.0
    %573 = vmatpush1.msra.mxu0 0.0
    %574 = vmatprep.subr.mxu0 0.0
    %575 = vmatpush1.msra.mxu0 0.0
    %576 = vmatprep.subr.mxu0 0.0
    %577 = vmatpush1.msra.mxu0 0.0
    %578 = vmatprep.mubr.f32.mxu0 0.0
    %579 = vmatmul.mubr.f32.gmra.mrb[0].mxu0 %v512
    %v580 = vpop.f32.mrb[0].mxu0
    %v581 = vadd.f32 %v508, %v580
    %v582 = vpop.f32.mrb[0].mxu0
    %583 = vdwg.mxu0
    %584 = vst [vmem:[#allocation2] sm:$0x3] %v581
    // Predicated region
    $region26: #{deep_classifier_forward.1} parent=1 // pred_check
      _
    $region27: #{deep_classifier_forward.1} parent=1 // pred_check_branch
      %586 = sbr.rel (0) target = $region29
    $region28: #{deep_classifier_forward.1} parent=1 // pred_region
      %s588 = ssub.s32 32, 32
      %589 = vsyncadd [#allocation3], %s588
      %s591 = sshll.u32 [#allocation2], 4
      %s592 = int_to_ptr.vmem [resolvable:$true] %s591
      %594 = dma.vmem_to_hbm [thread:$0]  %s592, 32, %s6, [#allocation3]
    $region29: #{deep_classifier_forward.1} parent=1 // pred_fallthru
      _
    // Predicated region
    $region30: #{deep_classifier_forward.1} parent=1 // pred_check
      _
    $region31: #{deep_classifier_forward.1} parent=1 // pred_check_branch
      %596 = sbr.rel (0) target = $region33
    $region32: #{deep_classifier_forward.1} parent=1 // pred_region
      %597 = dma.done [#allocation3], 32
    $region33: #{deep_classifier_forward.1} parent=1 // pred_fallthru
      _
    %598 = vsyncpa [#allocation3], 1

</llo_original>
